<compile_context>
chip_gen: v5e
topology: v5e:2x2
jax: 0.10.0
libtpu: 0.0.40
codegen_flags: <defaults>
</compile_context>

<pallas_src>
import functools

import jax
import jax.numpy as jnp
from jax.experimental import pallas as pl
from jax.experimental.pallas import tpu as pltpu


def _round_up(x, m):
    return ((x + m - 1) // m) * m


def _td_linear_kernel(x_ref, w_ref, b_ref, o_ref, acc_ref, *, compute_dtype):
    k = pl.program_id(2)

    @pl.when(k == 0)
    def _():
        acc_ref[...] = jnp.zeros_like(acc_ref)

    # bf16 MXU operands (halves MXU push cost, hits MXU peak), f32 accumulate.
    x = x_ref[...].astype(compute_dtype)
    w = w_ref[...].astype(compute_dtype)
    acc_ref[...] += jnp.dot(x, w, preferred_element_type=jnp.float32)

    @pl.when(k == pl.num_programs(2) - 1)
    def _():
        # bias is f32 (1, tn): broadcasts over rows in the add, fused here so
        # the output is written exactly once, lane-dense.
        o_ref[...] = (acc_ref[...] + b_ref[...]).astype(o_ref.dtype)


def time_distributed_linear(input_seq, weight, bias, *,
                            row_tile=256, n_tile=512, k_tile=1024,
                            compute_dtype=jnp.bfloat16):
    """Equivalent of TimeDistributed(nn.Linear(D_in, D_out))(input_seq).

    input_seq: (B, T, ..., D_in)
    weight:    (D_out, D_in)   (PyTorch nn.Linear layout)
    bias:      (D_out,)
    returns:   (B, T, ..., D_out)
    """
    assert input_seq.ndim > 2, "TimeDistributed requires rank > 2 input"
    D_in = input_seq.shape[-1]
    D_out, d_in_w = weight.shape
    assert d_in_w == D_in, "weight/input feature mismatch"

    lead_shape = input_seq.shape[:-1]
    N = 1
    for s in lead_shape:
        N *= s

    # ---- TimeDistributed flatten: (B, T, ..., D_in) -> (N, D_in) ----
    x2d = input_seq.reshape((N, D_in))
    wT = weight.T                       # (D_in, D_out): one-time HBM copy, amortized
    b2d = bias.astype(jnp.float32).reshape((1, D_out))

    # ---- tile selection: MXU-friendly, shrink for small dims ----
    row_tile = max(16, _round_up(row_tile, 16))   # sublane-safe for f32/bf16
    n_tile = max(128, _round_up(n_tile, 128))     # lane-dense (unmasked vst)
    k_tile = max(128, _round_up(k_tile, 128))

    tm = min(row_tile, _round_up(N, 16))
    if D_out <= n_tile:
        tn, D_out_p = D_out, D_out                # full-dim block (allowed by Pallas)
    else:
        tn, D_out_p = n_tile, _round_up(D_out, n_tile)
    if D_in <= k_tile:
        tk, D_in_p = D_in, D_in
    else:
        tk, D_in_p = k_tile, _round_up(D_in, k_tile)
    N_p = _round_up(N, tm)

    # ---- zero-pad ragged dims up to the tile grid (K padding adds exact 0) ----
    if (N_p, D_in_p) != (N, D_in):
        x2d = jnp.pad(x2d, ((0, N_p - N), (0, D_in_p - D_in)))
    if (D_in_p, D_out_p) != (D_in, D_out):
        wT = jnp.pad(wT, ((0, D_in_p - D_in), (0, D_out_p - D_out)))
    if D_out_p != D_out:
        b2d = jnp.pad(b2d, ((0, 0), (0, D_out_p - D_out)))

    grid = (N_p // tm, D_out_p // tn, D_in_p // tk)

    # ---- explicit VMEM budget: double-buffered in/out blocks + f32 acc ----
    vmem_bytes = (2 * tm * tk * x2d.dtype.itemsize
                  + 2 * tk * tn * wT.dtype.itemsize
                  + 2 * 1 * tn * 4
                  + 2 * tm * tn * input_seq.dtype.itemsize
                  + tm * tn * 4)
    vmem_limit = min(int(vmem_bytes) + (16 << 20), 64 << 20)

    kernel = functools.partial(_td_linear_kernel, compute_dtype=compute_dtype)

    out2d = pl.pallas_call(
        kernel,
        out_shape=jax.ShapeDtypeStruct((N_p, D_out_p), input_seq.dtype),
        grid_spec=pltpu.PrefetchScalarGridSpec(
            num_scalar_prefetch=0,
            grid=grid,
            in_specs=[
                pl.BlockSpec((tm, tk), lambda i, j, k: (i, k)),   # x row/K tile
                pl.BlockSpec((tk, tn), lambda i, j, k: (k, j)),   # W^T (D_in, D_out) tile
                pl.BlockSpec((1, tn), lambda i, j, k: (0, j)),    # bias lane tile
            ],
            out_specs=pl.BlockSpec((tm, tn), lambda i, j, k: (i, j)),
            scratch_shapes=[pltpu.VMEM((tm, tn), jnp.float32)],
        ),
        compiler_params=pltpu.CompilerParams(
            # rows / D_out shard across v7x's 2 TensorCores; K is a reduction.
            dimension_semantics=("parallel", "parallel", "arbitrary"),
            vmem_limit_bytes=vmem_limit,
        ),
    )(x2d, wT, b2d)

    # Drop padding, then TimeDistributed un-flatten back to (B, T, ..., D_out).
    out2d = out2d[:N, :D_out]
    return out2d.reshape(lead_shape + (D_out,))


if __name__ == "__main__":
    key = jax.random.PRNGKey(0)

    def make_inputs(B, T, D_in, D_out, k):
        kx, kw, kb = jax.random.split(k, 3)
        x = jax.random.normal(kx, (B, T, D_in), dtype=jnp.float32)
        bound = 1.0 / (D_in ** 0.5)
        w = jax.random.uniform(kw, (D_out, D_in), jnp.float32, -bound, bound)
        b = jax.random.uniform(kb, (D_out,), jnp.float32, -bound, bound)
        return x, w, b

    def reference(x, w, b):
        B, T, D_in = x.shape
        y = jax.lax.dot_general(
            x.reshape(B * T, D_in), w, (((1,), (1,)), ((), ())),
            precision=jax.lax.Precision.HIGHEST) + b
        return y.reshape(B, T, w.shape[0])

    k1, k2, _ = jax.random.split(key, 3)

    # 1) default fast path: bf16 MXU compute with f32 accumulation.
    x, w, b = make_inputs(2, 8, 128, 128, k1)
    out = jax.block_until_ready(time_distributed_linear(x, w, b))
    assert out.shape == (2, 8, 128)
    assert jnp.allclose(out, reference(x, w, b), atol=5e-2, rtol=5e-2)

    # 2) f32 compute path matches the reference tightly.
    out32 = jax.block_until_ready(
        time_distributed_linear(x, w, b, compute_dtype=jnp.float32))
    assert jnp.allclose(out32, reference(x, w, b), atol=1e-4, rtol=1e-4)

    # 3) ragged B*T and ragged D_in/D_out (padding path) + multi-tile grid.
    x, w, b = make_inputs(3, 5, 200, 150, k2)
    out = jax.block_until_ready(
        time_distributed_linear(x, w, b, n_tile=128, k_tile=128,
                                compute_dtype=jnp.float32))
    assert out.shape == (3, 5, 150)
    assert jnp.allclose(out, reference(x, w, b), atol=1e-4, rtol=1e-4)

    print("KERNEL_OK")
</pallas_src>

<mosaic_0001>
module attributes {stable_mosaic.version = 11 : i64} {
  func.func @_td_linear_kernel(%arg0: i32, %arg1: i32, %arg2: i32, %arg3: memref<16x128xf32, #tpu.memory_space<vmem>>, %arg4: memref<128x128xf32, #tpu.memory_space<vmem>>, %arg5: memref<1x128xf32, #tpu.memory_space<vmem>>, %arg6: memref<16x128xf32, #tpu.memory_space<vmem>>, %arg7: memref<16x128xf32, #tpu.memory_space<vmem>>) attributes {dimension_semantics = [#tpu.dimension_semantics<parallel>, #tpu.dimension_semantics<parallel>, #tpu.dimension_semantics<arbitrary>], iteration_bounds = array<i64: 1, 1, 1>, scalar_prefetch = 0 : i64, scratch_operands = 1 : i64, tpu.core_type = #tpu.core_type<tc>, window_params = [{transform_indices = @transform_0, window_bounds = array<i64: 16, 128>}, {transform_indices = @transform_1, window_bounds = array<i64: 128, 128>}, {transform_indices = @transform_2, window_bounds = array<i64: 1, 128>}, {transform_indices = @transform_3, window_bounds = array<i64: 16, 128>}]} {
    %c0_i32 = arith.constant 0 : i32
    %0 = arith.cmpi eq, %arg2, %c0_i32 : i32
    %1 = arith.extui %0 : i1 to i32
    %c0_i32_0 = arith.constant 0 : i32
    %2 = arith.cmpi ne, %1, %c0_i32_0 : i32
    scf.if %2 {
      %cst_10 = arith.constant 0.000000e+00 : f32
      %14 = vector.broadcast %cst_10 : f32 to vector<16x128xf32>
      %c0_11 = arith.constant 0 : index
      %c0_12 = arith.constant 0 : index
      %15 = vector.load %arg7[%c0_11, %c0_12] : memref<16x128xf32, #tpu.memory_space<vmem>>, vector<16x128xf32>
      tpu.vector_store %arg7[%c0_11, %c0_12], %14 {strides = array<i32>} : memref<16x128xf32, #tpu.memory_space<vmem>>, vector<16x128xf32>,
    } else {
    }
    %c0 = arith.constant 0 : index
    %c0_1 = arith.constant 0 : index
    %3 = vector.load %arg3[%c0, %c0_1] : memref<16x128xf32, #tpu.memory_space<vmem>>, vector<16x128xf32>
    %4 = arith.truncf %3 : vector<16x128xf32> to vector<16x128xbf16>
    %c0_2 = arith.constant 0 : index
    %c0_3 = arith.constant 0 : index
    %5 = vector.load %arg4[%c0_2, %c0_3] : memref<128x128xf32, #tpu.memory_space<vmem>>, vector<128x128xf32>
    %6 = arith.truncf %5 : vector<128x128xf32> to vector<128x128xbf16>
    %c0_4 = arith.constant 0 : index
    %c0_5 = arith.constant 0 : index
    %7 = vector.load %arg7[%c0_4, %c0_5] : memref<16x128xf32, #tpu.memory_space<vmem>>, vector<16x128xf32>
    %cst = arith.constant dense<0.000000e+00> : vector<16x128xf32>
    %8 = tpu.matmul %4, %6, %cst {dimension_numbers = #tpu.dot_dimension_numbers<[1], [0], [0], [1], [0, 0, 1, 1], [], []>} : vector<16x128xbf16>, vector<128x128xbf16>, vector<16x128xf32> -> vector<16x128xf32>
    %9 = arith.addf %7, %8 : vector<16x128xf32>
    %c0_6 = arith.constant 0 : index
    %c0_7 = arith.constant 0 : index
    %10 = vector.load %arg7[%c0_6, %c0_7] : memref<16x128xf32, #tpu.memory_space<vmem>>, vector<16x128xf32>
    tpu.vector_store %arg7[%c0_6, %c0_7], %9 {strides = array<i32>} : memref<16x128xf32, #tpu.memory_space<vmem>>, vector<16x128xf32>,
    %c0_i32_8 = arith.constant 0 : i32
    %11 = arith.cmpi eq, %arg2, %c0_i32_8 : i32
    %12 = arith.extui %11 : i1 to i32
    %c0_i32_9 = arith.constant 0 : i32
    %13 = arith.cmpi ne, %12, %c0_i32_9 : i32
    scf.if %13 {
      %c0_10 = arith.constant 0 : index
      %c0_11 = arith.constant 0 : index
      %14 = vector.load %arg7[%c0_10, %c0_11] : memref<16x128xf32, #tpu.memory_space<vmem>>, vector<16x128xf32>
      %c0_12 = arith.constant 0 : index
      %c0_13 = arith.constant 0 : index
      %15 = vector.load %arg5[%c0_12, %c0_13] : memref<1x128xf32, #tpu.memory_space<vmem>>, vector<1x128xf32>
      %16 = vector.broadcast %15 : vector<1x128xf32> to vector<16x128xf32>
      %17 = arith.addf %14, %16 : vector<16x128xf32>
      %c0_14 = arith.constant 0 : index
      %c0_15 = arith.constant 0 : index
      %18 = vector.load %arg6[%c0_14, %c0_15] : memref<16x128xf32, #tpu.memory_space<vmem>>, vector<16x128xf32>
      tpu.vector_store %arg6[%c0_14, %c0_15], %17 {strides = array<i32>} : memref<16x128xf32, #tpu.memory_space<vmem>>, vector<16x128xf32>,
    } else {
    }
    return
  }
  func.func @transform_0(%arg0: i32, %arg1: i32, %arg2: i32) -> (i32, i32) {
    %c0_i32 = arith.constant 0 : i32
    return %arg0, %arg2 : i32, i32
  }
  func.func @transform_1(%arg0: i32, %arg1: i32, %arg2: i32) -> (i32, i32) {
    %c0_i32 = arith.constant 0 : i32
    return %arg2, %arg1 : i32, i32
  }
  func.func @transform_2(%arg0: i32, %arg1: i32, %arg2: i32) -> (i32, i32) {
    %c0_i32 = arith.constant 0 : i32
    %c0_i32_0 = arith.constant 0 : i32
    return %c0_i32, %arg1 : i32, i32
  }
  func.func @transform_3(%arg0: i32, %arg1: i32, %arg2: i32) -> (i32, i32) {
    %c0_i32 = arith.constant 0 : i32
    return %arg0, %arg1 : i32, i32
  }
}

</mosaic_0001>

<llo_original>
// kernel: tpu_custom_call.1
$region0: #{tpu_custom_call.1}
  #allocation0 [shape = 'u32[]', space=smem, size = 0x4, offset = 0x4, fixed_abs, tag = 'smem constant byte address 0x4 - core index']
  #allocation1 [shape = 'u32[72,128]{1,0:T(1,128)}', space=vmem, size = 0x9000, scoped, tag = 'internal scratch']
  #allocation2 [shape = 'f32[16,128]{1,0:T(8,128)}', space=vmem, size = 0x2000, scoped, tag = 'scratch operand']
  %s0 = inlined_call_operand.hbm [shape: f32[16,128], index: 0, kind: input, shape index: {}]
  %s1 = inlined_call_operand.hbm [shape: f32[128,128], index: 1, kind: input, shape index: {}]
  %s2 = inlined_call_operand.vmem [shape: f32[1,128], index: 2, kind: input, shape index: {}]
  %s3 = inlined_call_operand.hbm [shape: f32[16,128], index: 3, kind: output, shape index: {}]
  %s4 = sld [smem:[#allocation0]]
  $region38: #{tpu_custom_call.1} parent=0
    _
  %s6 = ssub.s32 1, %s4
  %s7 = scalar_select 0, %s6, %s4
  $region1: #{tpu_custom_call.1} parent=0
    #allocation3 [shape = 'u8[8192]{0}', space=vmem, size = 0x2000, scoped, tag = 'input window, operand 0, single buffered']
    #allocation4 [shape = 's32[1]{0}', space=sflag, size = 0x4, scoped, tag = 'scoped memory for tpu_custom_call.1']
    #allocation5 [shape = 's32[1]{0}', space=sflag, size = 0x4, scoped, tag = 'scoped memory for tpu_custom_call.1']
    #allocation6 [shape = 'u8[65536]{0}', space=vmem, size = 0x10000, scoped, tag = 'input window, operand 1, single buffered']
    #allocation7 [shape = 's32[1]{0}', space=sflag, size = 0x4, scoped, tag = 'scoped memory for tpu_custom_call.1']
    #allocation8 [shape = 'u8[8192]{0}', space=vmem, size = 0x2000, scoped, tag = 'output window, operand 0, single buffered']
    %8 = vsyncpa [#allocation4], 0
    %9 = vsyncpa [#allocation7], 0
    %10 = vsyncpa [#allocation5], 0
    // Predicated region
    $region2: #{tpu_custom_call.1} parent=1 // pred_check
      _
    $region3: #{tpu_custom_call.1} parent=1 // pred_check_branch
      %12 = sbr.rel (0) target = $region5
    $region4: #{tpu_custom_call.1} parent=1 // pred_region
      %14 = vsyncadd [#allocation4], 0
      %s15 = sshll.u32 %s0, 4
      %s16 = int_to_ptr.hbm [resolvable:$true] %s15
      %s17 = sshll.u32 [#allocation3], 4
      %s18 = int_to_ptr.vmem [resolvable:$true] %s17
      %23 = dma.hbm_to_vmem [thread:$0]  %s16, 256, %s18, [#allocation4], 128, 128, 8
    $region5: #{tpu_custom_call.1} parent=1 // pred_fallthru
      _
    // Predicated region
    $region6: #{tpu_custom_call.1} parent=1 // pred_check
      _
    $region7: #{tpu_custom_call.1} parent=1 // pred_check_branch
      %25 = sbr.rel (0) target = $region9
    $region8: #{tpu_custom_call.1} parent=1 // pred_region
      %27 = vsyncadd [#allocation7], 0
      %s28 = sshll.u32 %s1, 4
      %s29 = int_to_ptr.hbm [resolvable:$true] %s28
      %s30 = sshll.u32 [#allocation6], 4
      %s31 = int_to_ptr.vmem [resolvable:$true] %s30
      %36 = dma.hbm_to_vmem [thread:$0]  %s29, 2048, %s31, [#allocation7], 128, 128, 8
    $region9: #{tpu_custom_call.1} parent=1 // pred_fallthru
      _
    // Predicated region
    $region10: #{tpu_custom_call.1} parent=1 // pred_check
      _
    $region11: #{tpu_custom_call.1} parent=1 // pred_check_branch
      %38 = sbr.rel (0) target = $region13
    $region12: #{tpu_custom_call.1} parent=1 // pred_region
      _
    $region13: #{tpu_custom_call.1} parent=1 // pred_fallthru
      _
    // Predicated region
    $region14: #{tpu_custom_call.1} parent=1 // pred_check
      _
    $region15: #{tpu_custom_call.1} parent=1 // pred_check_branch
      %40 = sbr.rel (0) target = $region17
    $region16: #{tpu_custom_call.1} parent=1 // pred_region
      %42 = dma.done [#allocation4], 256
    $region17: #{tpu_custom_call.1} parent=1 // pred_fallthru
      _
    // Predicated region
    $region18: #{tpu_custom_call.1} parent=1 // pred_check
      _
    $region19: #{tpu_custom_call.1} parent=1 // pred_check_branch
      %44 = sbr.rel (0) target = $region21
    $region20: #{tpu_custom_call.1} parent=1 // pred_region
      %46 = dma.done [#allocation7], 2048
    $region21: #{tpu_custom_call.1} parent=1 // pred_fallthru
      _
    %p47 = scmp.eq.s32.totalorder 0, 0
    // Predicated region
    $region22: #{tpu_custom_call.1} parent=1 // pred_check
      %p48 = pneg %p47
    $region23: #{tpu_custom_call.1} parent=1 // pred_check_branch
      %50 = sbr.rel (%p48) target = $region25
    $region24: #{tpu_custom_call.1} parent=1 // pred_region
      %51 = vst [vmem:[#allocation2] sm:$0xff] 0.0
      %52 = vst [vmem:[#allocation2 + $0x8] sm:$0xff] 0.0
    $region25: #{tpu_custom_call.1} parent=1 // pred_fallthru
      _
    %v53 = vld [vmem:[#allocation3] sm:$0xff]
    %v54 = vld [vmem:[#allocation3 + $0x8] sm:$0xff]
    %v55 = vpack.c.bf16 %v54, %v53
    %v56 = vld [vmem:[#allocation6] sm:$0xff]
    %v57 = vld [vmem:[#allocation6 + $0x8] sm:$0xff]
    %v58 = vld [vmem:[#allocation6 + $0x10] sm:$0xff]
    %v59 = vld [vmem:[#allocation6 + $0x18] sm:$0xff]
    %v60 = vld [vmem:[#allocation6 + $0x20] sm:$0xff]
    %v61 = vld [vmem:[#allocation6 + $0x28] sm:$0xff]
    %v62 = vld [vmem:[#allocation6 + $0x30] sm:$0xff]
    %v63 = vld [vmem:[#allocation6 + $0x38] sm:$0xff]
    %v64 = vld [vmem:[#allocation6 + $0x40] sm:$0xff]
    %v65 = vld [vmem:[#allocation6 + $0x48] sm:$0xff]
    %v66 = vld [vmem:[#allocation6 + $0x50] sm:$0xff]
    %v67 = vld [vmem:[#allocation6 + $0x58] sm:$0xff]
    %v68 = vld [vmem:[#allocation6 + $0x60] sm:$0xff]
    %v69 = vld [vmem:[#allocation6 + $0x68] sm:$0xff]
    %v70 = vld [vmem:[#allocation6 + $0x70] sm:$0xff]
    %v71 = vld [vmem:[#allocation6 + $0x78] sm:$0xff]
    %v72 = vpack.c.bf16 %v57, %v56
    %v73 = vpack.c.bf16 %v59, %v58
    %v74 = vpack.c.bf16 %v61, %v60
    %v75 = vpack.c.bf16 %v63, %v62
    %v76 = vpack.c.bf16 %v65, %v64
    %v77 = vpack.c.bf16 %v67, %v66
    %v78 = vpack.c.bf16 %v69, %v68
    %v79 = vpack.c.bf16 %v71, %v70
    %v80 = vld [vmem:[#allocation2] sm:$0xff]
    %v81 = vld [vmem:[#allocation2 + $0x8] sm:$0xff]
    %82 = vmatpush.bf16.msra.mxu0 %v79
    %83 = vmatpush.bf16.msra.mxu0 %v78
    %84 = vmatpush.bf16.msra.mxu0 %v77
    %85 = vmatpush.bf16.msra.mxu0 %v76
    %86 = vmatpush.bf16.msra.mxu0 %v75
    %87 = vmatpush.bf16.msra.mxu0 %v74
    %88 = vmatpush.bf16.msra.mxu0 %v73
    %89 = vmatpush.bf16.msra.mxu0 %v72
    %90 = vmatmul.bf16.gmra.mxu0 %v55
    %v91 = vpop.f32.mrf.mxu0
    %v92 = vadd.f32 0.0, %v91
    %v93 = vpop.f32.mrf.mxu0
    %v94 = vadd.f32 0.0, %v93
    %95 = vdwg.mxu0
    %v96 = vadd.f32 %v80, %v92
    %v97 = vadd.f32 %v81, %v94
    %98 = vst [vmem:[#allocation2] sm:$0xff] %v96
    %99 = vst [vmem:[#allocation2 + $0x8] sm:$0xff] %v97
    // Predicated region
    $region26: #{tpu_custom_call.1} parent=1 // pred_check
      %p100 = pneg %p47
    $region27: #{tpu_custom_call.1} parent=1 // pred_check_branch
      %102 = sbr.rel (%p100) target = $region29
    $region28: #{tpu_custom_call.1} parent=1 // pred_region
      %v103 = vld [vmem:[#allocation2] sm:$0xff]
      %v104 = vld [vmem:[#allocation2 + $0x8] sm:$0xff]
      %v105 = vld [vmem:[%s2] sm:$0x1]
      %v107 = vperm.slane %v105, 0
      %v109 = vadd.f32 %v103, %v107
      %v110 = vadd.f32 %v104, %v107
      %111 = vst [vmem:[#allocation8] sm:$0xff] %v109
      %112 = vst [vmem:[#allocation8 + $0x8] sm:$0xff] %v110
    $region29: #{tpu_custom_call.1} parent=1 // pred_fallthru
      _
    // Predicated region
    $region30: #{tpu_custom_call.1} parent=1 // pred_check
      _
    $region31: #{tpu_custom_call.1} parent=1 // pred_check_branch
      %114 = sbr.rel (0) target = $region33
    $region32: #{tpu_custom_call.1} parent=1 // pred_region
      %116 = vsyncadd [#allocation5], 0
      %s117 = sshll.u32 [#allocation8], 4
      %s118 = int_to_ptr.vmem [resolvable:$true] %s117
      %s119 = sshll.u32 %s3, 4
      %s120 = int_to_ptr.hbm [resolvable:$true] %s119
      %125 = dma.vmem_to_hbm [thread:$0]  %s118, 256, %s120, [#allocation5], 128, 128, 8
    $region33: #{tpu_custom_call.1} parent=1 // pred_fallthru
      _
    // Predicated region
    $region34: #{tpu_custom_call.1} parent=1 // pred_check
      _
    $region35: #{tpu_custom_call.1} parent=1 // pred_check_branch
      %127 = sbr.rel (0) target = $region37
    $region36: #{tpu_custom_call.1} parent=1 // pred_region
      %129 = dma.done [#allocation5], 256
    $region37: #{tpu_custom_call.1} parent=1 // pred_fallthru
      _
    %130 = vsyncpa [#allocation4], 1
    %131 = vsyncpa [#allocation7], 1
    %132 = vsyncpa [#allocation5], 1

</llo_original>
